<compile_context>
chip_gen: v7x
topology: tpu7x:2x2x1
jax: 0.10.0
libtpu: 0.0.40
codegen_flags: <defaults>
</compile_context>

<pallas_src>
import functools

import jax
import jax.numpy as jnp
from jax import lax
from jax.experimental import pallas as pl
from jax.experimental.pallas import tpu as pltpu

EPS_COS = 1e-8          # F.cosine_similarity default eps
EPS2 = EPS_COS * EPS_COS
CLAMP_MIN = 1e-6        # torch.clamp(cos_sim, 1e-06)


def _round_up(x, m):
    return (x + m - 1) // m * m


def _ge2e_kernel(xf_ref, cent_ref, invcn_ref, cn2row_ref, w_ref, b_ref,
                 out_ref, *, n_spk, n_views, n_rows, row_tile, mm_dtype):
    step = pl.program_id(0)

    w = w_ref[0, 0]
    b = b_ref[0, 0]

    xf = xf_ref[...]                       # (TR, Dp)  f32, lane-padded if needed
    ct = cent_ref[...]                     # (Dp, Np)  f32/bf16 (cast in wrapper)
    inv_cn = invcn_ref[...]                # (1, Np)   f32  rsqrt(||c_j||^2)
    cn2_row = cn2row_ref[...]              # (TR, 1)   f32  ||c_{row's speaker}||^2

    tr = xf.shape[0]
    np_cols = ct.shape[1]

    # MXU: dots[r, j] = <x_r, centroid_j>.  Centroids pre-transposed in the
    # wrapper -> canonical contraction, no per-step transpose of the resident tile.
    dots = jnp.dot(xf.astype(mm_dtype), ct, preferred_element_type=jnp.float32)

    # Division-free diagonal / validity masks.
    row_ids = step * row_tile + lax.broadcasted_iota(jnp.int32, (tr, 1), 0)
    col_ids = lax.broadcasted_iota(jnp.int32, (1, np_cols), 1)
    col_lo = col_ids * n_views
    is_diag = (row_ids >= col_lo) & (row_ids < col_lo + n_views)   # col == row // M
    col_valid = col_ids < n_spk                                    # (1, Np)
    row_valid = row_ids < n_rows                                   # (TR, 1)

    # Squared norm of x rows; EUP rsqrt instead of divides.
    xn2 = jnp.sum(xf * xf, axis=-1, keepdims=True)     # (TR, 1)
    inv_xn = lax.rsqrt(jnp.maximum(xn2, EPS2))

    cos = dots * inv_xn * inv_cn                       # (TR, Np)

    # Exclusive-centroid (diagonal) cosine, algebraically from quantities on hand:
    #   exc        = (M*c - x) / (M-1)
    #   x . exc    = (M*<x,c> - ||x||^2) / (M-1)
    #   ||exc||^2  = (M^2||c||^2 - 2M<x,c> + ||x||^2) / (M-1)^2
    m = jnp.float32(n_views)
    inv_m1 = jnp.float32(1.0 / (n_views - 1))
    dot_diag = jnp.sum(jnp.where(is_diag, dots, 0.0), axis=-1, keepdims=True)
    ddot = (m * dot_diag - xn2) * inv_m1
    en2 = (m * m * cn2_row - 2.0 * m * dot_diag + xn2) * (inv_m1 * inv_m1)
    inv_en = lax.rsqrt(jnp.maximum(en2, EPS2))
    diag_cos = ddot * inv_xn * inv_en                  # (TR, 1)

    cos = jnp.where(is_diag, diag_cos, cos)
    cos = jnp.maximum(cos, CLAMP_MIN)                  # clamp AFTER diag substitution
    logits = cos * w + b                               # w used unclamped (per reference)

    # Target logit is the (clamped) diagonal column -> no select + lane reduce.
    tgt = jnp.maximum(diag_cos, CLAMP_MIN) * w + b     # (TR, 1)

    # Scalar softmax shift: cos in [1e-6, 1] => logit <= max(w, w*1e-6) + b.
    # Exact-stable for |w| well below ~88 (GE2E w ~ 10-30); removes a per-row
    # cross-lane max on the contended XLU.
    mx = jnp.maximum(w, w * CLAMP_MIN) + b
    ex = jnp.where(col_valid, jnp.exp(logits - mx), 0.0)
    lse = jnp.log(jnp.sum(ex, axis=-1, keepdims=True)) + mx

    # Per-row CE; garbage rows of a ragged last tile are masked to 0 (and their
    # stores are OOB-dropped anyway).
    out_ref[...] = jnp.where(row_valid, lse - tgt, 0.0)


def ge2e_loss(x, w=10.0, b=-5.0, *, row_tile=1024, use_bf16_matmul=None):
    """x: (batch_size, num_views, emb_dim), num_views >= 2. Returns scalar loss."""
    x = x.astype(jnp.float32)
    N, M, D = x.shape
    assert M >= 2
    NM = N * M

    if use_bf16_matmul is None:
        # bf16 matmul operands are a clear win only on v5e (no f32 MXU path,
        # lowest HBM bandwidth); keep exact f32 elsewhere.
        try:
            kind = jax.devices()[0].device_kind.lower()
            use_bf16_matmul = ("v5 lite" in kind) or ("v5e" in kind)
        except Exception:
            use_bf16_matmul = False
    mm_dtype = jnp.bfloat16 if use_bf16_matmul else jnp.float32

    # Wrapper-side plumbing (cheap, left to XLA): centroids + tiny padded tables.
    centroids = jnp.mean(x, axis=1)                                # (N, D)
    xf = x.reshape(NM, D)

    # Pad the lane dim ONLY if D is not already a multiple of 128 -- avoids a
    # full padded HBM copy of xf in the common case.  Rows are never padded.
    Dp = _round_up(D, 128)
    xf_in = xf if Dp == D else jnp.pad(xf, ((0, 0), (0, Dp - D)))   # (NM, Dp)
    Np = _round_up(N, 128)

    cent_t = jnp.pad(centroids, ((0, Np - N), (0, Dp - D))).T       # (Dp, Np)
    cn2 = jnp.sum(centroids * centroids, axis=-1)                   # (N,)
    cn2_pad = jnp.pad(cn2, (0, Np - N))[None, :]                    # (1, Np)
    inv_cn = lax.rsqrt(jnp.maximum(cn2_pad, EPS2))                  # (1, Np)
    cn2_rows = jnp.repeat(cn2, M)[:, None]                          # (NM, 1)

    # Row tile: multiple of 8, big enough to hide per-step overhead, capped so
    # the double-buffered working set stays within scoped VMEM on all chips
    # (v7x: 64 MiB physical / 32 MiB scoped default).
    TR = _round_up(min(row_tile, _round_up(NM, 8)), 8)
    vmem_budget = 24 * 1024 * 1024
    while TR > 8 and 4 * (2 * TR * Dp + 2 * Np * Dp + 8 * TR) > vmem_budget:
        TR = _round_up(TR // 2, 8)
    grid = pl.cdiv(NM, TR)

    w2 = jnp.asarray(w, jnp.float32).reshape(1, 1)
    b2 = jnp.asarray(b, jnp.float32).reshape(1, 1)

    kernel = functools.partial(
        _ge2e_kernel, n_spk=N, n_views=M, n_rows=NM, row_tile=TR,
        mm_dtype=mm_dtype)

    per_row = pl.pallas_call(
        kernel,
        out_shape=jax.ShapeDtypeStruct((NM, 1), jnp.float32),
        grid=(grid,),
        in_specs=[
            pl.BlockSpec((TR, Dp), lambda i: (i, 0)),              # row tile of xf
            pl.BlockSpec((Dp, Np), lambda i: (0, 0)),              # centroids^T, resident
            pl.BlockSpec((1, Np), lambda i: (0, 0)),               # rsqrt centroid norms
            pl.BlockSpec((TR, 1), lambda i: (i, 0)),               # per-row ||c_own||^2
            pl.BlockSpec(memory_space=pltpu.MemorySpace.SMEM),     # w
            pl.BlockSpec(memory_space=pltpu.MemorySpace.SMEM),     # b
        ],
        out_specs=pl.BlockSpec((TR, 1), lambda i: (i, 0)),         # per-row loss
        compiler_params=pltpu.CompilerParams(
            dimension_semantics=("parallel",),                     # shard tiles across TCs (v7x)
            vmem_limit_bytes=32 * 1024 * 1024),
    )(xf_in, cent_t.astype(mm_dtype), inv_cn, cn2_rows, w2, b2)

    # Mean cross-entropy over the N*M rows (tiny wrapper-side reduction).
    return jnp.sum(per_row) * jnp.float32(1.0 / NM)


if __name__ == "__main__":
    key = jax.random.PRNGKey(0)
    N, M, D = 8, 4, 32   # batch (speakers), num_views, emb_dim
    x = jax.random.normal(key, (N, M, D), dtype=jnp.float32)

    # Deterministic parameters matching nn.Parameter init in __init__.
    init_w, init_b = 10.0, -5.0

    loss = ge2e_loss(x, init_w, init_b)
    jax.block_until_ready(loss)
    print("KERNEL_OK")
</pallas_src>

<mosaic_0001>
module attributes {stable_mosaic.version = 11 : i64} {
  func.func @_ge2e_kernel(%arg0: i32, %arg1: memref<32x128xf32, #tpu.memory_space<vmem>>, %arg2: memref<128x128xf32, #tpu.memory_space<vmem>>, %arg3: memref<1x128xf32, #tpu.memory_space<vmem>>, %arg4: memref<32x1xf32, #tpu.memory_space<vmem>>, %arg5: memref<1x1xf32, #tpu.memory_space<smem>>, %arg6: memref<1x1xf32, #tpu.memory_space<smem>>, %arg7: memref<32x1xf32, #tpu.memory_space<vmem>>) attributes {dimension_semantics = [#tpu.dimension_semantics<parallel>], iteration_bounds = array<i64: 1>, scalar_prefetch = 0 : i64, scratch_operands = 0 : i64, tpu.core_type = #tpu.core_type<tc>, window_params = [{transform_indices = @transform_0, window_bounds = array<i64: 32, 128>}, {pipeline_mode = #tpu.pipeline_mode<synchronous>, transform_indices = @transform_1, window_bounds = array<i64: 128, 128>}, {pipeline_mode = #tpu.pipeline_mode<synchronous>, transform_indices = @transform_2, window_bounds = array<i64: 1, 128>}, {transform_indices = @transform_3, window_bounds = array<i64: 32, 1>}, {transform_indices = @transform_4, window_bounds = array<i64: 1, 1>}, {transform_indices = @transform_5, window_bounds = array<i64: 1, 1>}, {transform_indices = @transform_6, window_bounds = array<i64: 32, 1>}]} {
    %c0 = arith.constant 0 : index
    %c0_0 = arith.constant 0 : index
    %0 = memref.load %arg5[%c0, %c0_0] : memref<1x1xf32, #tpu.memory_space<smem>>
    %c0_1 = arith.constant 0 : index
    %c0_2 = arith.constant 0 : index
    %1 = memref.load %arg6[%c0_1, %c0_2] : memref<1x1xf32, #tpu.memory_space<smem>>
    %c0_3 = arith.constant 0 : index
    %c0_4 = arith.constant 0 : index
    %2 = vector.load %arg1[%c0_3, %c0_4] : memref<32x128xf32, #tpu.memory_space<vmem>>, vector<32x128xf32>
    %c0_5 = arith.constant 0 : index
    %c0_6 = arith.constant 0 : index
    %3 = vector.load %arg2[%c0_5, %c0_6] : memref<128x128xf32, #tpu.memory_space<vmem>>, vector<128x128xf32>
    %c0_7 = arith.constant 0 : index
    %c0_8 = arith.constant 0 : index
    %4 = vector.load %arg3[%c0_7, %c0_8] : memref<1x128xf32, #tpu.memory_space<vmem>>, vector<1x128xf32>
    %c0_9 = arith.constant 0 : index
    %c0_10 = arith.constant 0 : index
    %5 = vector.load %arg4[%c0_9, %c0_10] : memref<32x1xf32, #tpu.memory_space<vmem>>, vector<32x1xf32>
    %cst = arith.constant dense<0.000000e+00> : vector<32x128xf32>
    %6 = tpu.matmul %2, %3, %cst {dimension_numbers = #tpu.dot_dimension_numbers<[1], [0], [0], [1], [0, 0, 1, 1], [], []>} : vector<32x128xf32>, vector<128x128xf32>, vector<32x128xf32> -> vector<32x128xf32>
    %c32_i32 = arith.constant 32 : i32
    %7 = arith.muli %arg0, %c32_i32 : i32
    %8 = tpu.iota {dimensions = array<i32: 0>} : vector<32x1xi32>
    %9 = vector.broadcast %7 : i32 to vector<32x1xi32>
    %10 = arith.addi %9, %8 : vector<32x1xi32>
    %11 = tpu.iota {dimensions = array<i32: 1>} : vector<1x128xi32>
    %c4_i32 = arith.constant 4 : i32
    %12 = vector.broadcast %c4_i32 : i32 to vector<1x128xi32>
    %13 = arith.muli %11, %12 : vector<1x128xi32>
    %14 = vector.broadcast %10 : vector<32x1xi32> to vector<32x128xi32>
    %15 = vector.broadcast %13 : vector<1x128xi32> to vector<32x128xi32>
    %16 = arith.cmpi sge, %14, %15 : vector<32x128xi32>
    %c4_i32_11 = arith.constant 4 : i32
    %17 = vector.broadcast %c4_i32_11 : i32 to vector<1x128xi32>
    %18 = arith.addi %13, %17 : vector<1x128xi32>
    %19 = vector.broadcast %10 : vector<32x1xi32> to vector<32x128xi32>
    %20 = vector.broadcast %18 : vector<1x128xi32> to vector<32x128xi32>
    %21 = arith.cmpi slt, %19, %20 : vector<32x128xi32>
    %22 = arith.andi %16, %21 : vector<32x128xi1>
    %c8_i32 = arith.constant 8 : i32
    %23 = vector.broadcast %c8_i32 : i32 to vector<1x128xi32>
    %24 = arith.cmpi slt, %11, %23 : vector<1x128xi32>
    %c32_i32_12 = arith.constant 32 : i32
    %25 = vector.broadcast %c32_i32_12 : i32 to vector<32x1xi32>
    %26 = arith.cmpi slt, %10, %25 : vector<32x1xi32>
    %27 = arith.mulf %2, %2 : vector<32x128xf32>
    %cst_13 = arith.constant dense<0.000000e+00> : vector<32xf32>
    %28 = vector.multi_reduction <add>, %27, %cst_13 [1] : vector<32x128xf32> to vector<32xf32>
    %29 = vector.shape_cast %28 : vector<32xf32> to vector<32x1xf32>
    %cst_14 = arith.constant 1.000000e-16 : f32
    %30 = vector.broadcast %cst_14 : f32 to vector<32x1xf32>
    %31 = arith.maximumf %29, %30 : vector<32x1xf32>
    %32 = math.rsqrt %31 : vector<32x1xf32>
    %33 = vector.broadcast %32 : vector<32x1xf32> to vector<32x128xf32>
    %34 = arith.mulf %6, %33 : vector<32x128xf32>
    %35 = vector.broadcast %4 : vector<1x128xf32> to vector<32x128xf32>
    %36 = arith.mulf %34, %35 : vector<32x128xf32>
    %cst_15 = arith.constant 0.000000e+00 : f32
    %37 = vector.broadcast %cst_15 : f32 to vector<32x128xf32>
    %38 = arith.select %22, %6, %37 : vector<32x128xi1>, vector<32x128xf32>
    %cst_16 = arith.constant dense<0.000000e+00> : vector<32xf32>
    %39 = vector.multi_reduction <add>, %38, %cst_16 [1] : vector<32x128xf32> to vector<32xf32>
    %40 = vector.shape_cast %39 : vector<32xf32> to vector<32x1xf32>
    %cst_17 = arith.constant 4.000000e+00 : f32
    %41 = vector.broadcast %cst_17 : f32 to vector<32x1xf32>
    %42 = arith.mulf %41, %40 : vector<32x1xf32>
    %43 = arith.subf %42, %29 : vector<32x1xf32>
    %cst_18 = arith.constant 0.333333343 : f32
    %44 = vector.broadcast %cst_18 : f32 to vector<32x1xf32>
    %45 = arith.mulf %43, %44 : vector<32x1xf32>
    %cst_19 = arith.constant 4.000000e+00 : f32
    %cst_20 = arith.constant 4.000000e+00 : f32
    %46 = arith.mulf %cst_19, %cst_20 : f32
    %47 = vector.broadcast %46 : f32 to vector<32x1xf32>
    %48 = arith.mulf %47, %5 : vector<32x1xf32>
    %cst_21 = arith.constant 2.000000e+00 : f32
    %cst_22 = arith.constant 4.000000e+00 : f32
    %49 = arith.mulf %cst_21, %cst_22 : f32
    %50 = vector.broadcast %49 : f32 to vector<32x1xf32>
    %51 = arith.mulf %50, %40 : vector<32x1xf32>
    %52 = arith.subf %48, %51 : vector<32x1xf32>
    %53 = arith.addf %52, %29 : vector<32x1xf32>
    %cst_23 = arith.constant 0.333333343 : f32
    %cst_24 = arith.constant 0.333333343 : f32
    %54 = arith.mulf %cst_23, %cst_24 : f32
    %55 = vector.broadcast %54 : f32 to vector<32x1xf32>
    %56 = arith.mulf %53, %55 : vector<32x1xf32>
    %cst_25 = arith.constant 1.000000e-16 : f32
    %57 = vector.broadcast %cst_25 : f32 to vector<32x1xf32>
    %58 = arith.maximumf %56, %57 : vector<32x1xf32>
    %59 = math.rsqrt %58 : vector<32x1xf32>
    %60 = arith.mulf %45, %32 : vector<32x1xf32>
    %61 = arith.mulf %60, %59 : vector<32x1xf32>
    %62 = vector.shape_cast %61 : vector<32x1xf32> to vector<32x1xf32>
    %63 = vector.broadcast %62 : vector<32x1xf32> to vector<32x128xf32>
    %64 = arith.select %22, %63, %36 : vector<32x128xi1>, vector<32x128xf32>
    %cst_26 = arith.constant 9.99999997E-7 : f32
    %65 = vector.broadcast %cst_26 : f32 to vector<32x128xf32>
    %66 = arith.maximumf %64, %65 : vector<32x128xf32>
    %67 = vector.broadcast %0 : f32 to vector<32x128xf32>
    %68 = arith.mulf %66, %67 : vector<32x128xf32>
    %69 = vector.broadcast %1 : f32 to vector<32x128xf32>
    %70 = arith.addf %68, %69 : vector<32x128xf32>
    %cst_27 = arith.constant 9.99999997E-7 : f32
    %71 = vector.broadcast %cst_27 : f32 to vector<32x1xf32>
    %72 = arith.maximumf %61, %71 : vector<32x1xf32>
    %73 = vector.broadcast %0 : f32 to vector<32x1xf32>
    %74 = arith.mulf %72, %73 : vector<32x1xf32>
    %75 = vector.broadcast %1 : f32 to vector<32x1xf32>
    %76 = arith.addf %74, %75 : vector<32x1xf32>
    %cst_28 = arith.constant 9.99999997E-7 : f32
    %77 = arith.mulf %0, %cst_28 : f32
    %78 = arith.maximumf %0, %77 : f32
    %79 = arith.addf %78, %1 : f32
    %80 = vector.broadcast %79 : f32 to vector<32x128xf32>
    %81 = arith.subf %70, %80 : vector<32x128xf32>
    %82 = math.exp %81 : vector<32x128xf32>
    %cst_29 = arith.constant 0.000000e+00 : f32
    %83 = vector.shape_cast %24 : vector<1x128xi1> to vector<1x128xi1>
    %84 = vector.broadcast %83 : vector<1x128xi1> to vector<32x128xi1>
    %85 = vector.broadcast %cst_29 : f32 to vector<32x128xf32>
    %86 = arith.select %84, %82, %85 : vector<32x128xi1>, vector<32x128xf32>
    %cst_30 = arith.constant dense<0.000000e+00> : vector<32xf32>
    %87 = vector.multi_reduction <add>, %86, %cst_30 [1] : vector<32x128xf32> to vector<32xf32>
    %88 = vector.shape_cast %87 : vector<32xf32> to vector<32x1xf32>
    %89 = math.log %88 : vector<32x1xf32>
    %90 = vector.broadcast %79 : f32 to vector<32x1xf32>
    %91 = arith.addf %89, %90 : vector<32x1xf32>
    %92 = arith.subf %91, %76 : vector<32x1xf32>
    %cst_31 = arith.constant 0.000000e+00 : f32
    %93 = vector.broadcast %cst_31 : f32 to vector<32x1xf32>
    %94 = arith.select %26, %92, %93 : vector<32x1xi1>, vector<32x1xf32>
    %c0_32 = arith.constant 0 : index
    %c0_33 = arith.constant 0 : index
    %95 = vector.load %arg7[%c0_32, %c0_33] : memref<32x1xf32, #tpu.memory_space<vmem>>, vector<32x1xf32>
    tpu.vector_store %arg7[%c0_32, %c0_33], %94 {strides = array<i32>} : memref<32x1xf32, #tpu.memory_space<vmem>>, vector<32x1xf32>,
    return
  }
  func.func @transform_0(%arg0: i32) -> (i32, i32) {
    %c0_i32 = arith.constant 0 : i32
    %c0_i32_0 = arith.constant 0 : i32
    return %arg0, %c0_i32 : i32, i32
  }
  func.func @transform_1(%arg0: i32) -> (i32, i32) {
    %c0_i32 = arith.constant 0 : i32
    %c0_i32_0 = arith.constant 0 : i32
    %c0_i32_1 = arith.constant 0 : i32
    return %c0_i32, %c0_i32_0 : i32, i32
  }
  func.func @transform_2(%arg0: i32) -> (i32, i32) {
    %c0_i32 = arith.constant 0 : i32
    %c0_i32_0 = arith.constant 0 : i32
    %c0_i32_1 = arith.constant 0 : i32
    return %c0_i32, %c0_i32_0 : i32, i32
  }
  func.func @transform_3(%arg0: i32) -> (i32, i32) {
    %c0_i32 = arith.constant 0 : i32
    %c0_i32_0 = arith.constant 0 : i32
    return %arg0, %c0_i32 : i32, i32
  }
  func.func @transform_4(%arg0: i32) -> (i32, i32) {
    %c0_i32 = arith.constant 0 : i32
    %c0_i32_0 = arith.constant 0 : i32
    %c0_i32_1 = arith.constant 0 : i32
    return %c0_i32, %c0_i32_0 : i32, i32
  }
  func.func @transform_5(%arg0: i32) -> (i32, i32) {
    %c0_i32 = arith.constant 0 : i32
    %c0_i32_0 = arith.constant 0 : i32
    %c0_i32_1 = arith.constant 0 : i32
    return %c0_i32, %c0_i32_0 : i32, i32
  }
  func.func @transform_6(%arg0: i32) -> (i32, i32) {
    %c0_i32 = arith.constant 0 : i32
    %c0_i32_0 = arith.constant 0 : i32
    return %arg0, %c0_i32 : i32, i32
  }
}

</mosaic_0001>

<llo_original>
// kernel: tpu_custom_call.1
$region0: #{tpu_custom_call.1}
  #allocation0 [shape = 'u32[]', space=smem, size = 0x4, offset = 0x4, fixed_abs, tag = 'smem constant byte address 0x4 - core index']
  #allocation1 [shape = 'u32[144,128]{1,0:T(1,128)}', space=vmem, size = 0x12000, scoped, tag = 'internal scratch']
  #allocation2 [shape = 'f32[1,1]{1,0:T(1,128)S(6)}', space=smem, size = 0x200, scoped, tag = 'scoped memory for tpu_custom_call.1']
  #allocation3 [shape = 'f32[1,1]{1,0:T(1,128)S(6)}', space=smem, size = 0x200, scoped, tag = 'scoped memory for tpu_custom_call.1']
  %s0 = inlined_call_operand.vmem [shape: f32[32,128], index: 0, kind: input, shape index: {}]
  %s1 = inlined_call_operand.hbm [shape: f32[128,128], index: 1, kind: input, shape index: {}]
  %s2 = inlined_call_operand.vmem [shape: f32[1,128], index: 2, kind: input, shape index: {}]
  %s3 = inlined_call_operand.vmem [shape: f32[32,1], index: 3, kind: input, shape index: {}]
  %s4 = inlined_call_operand.<no memory space> [shape: f32[1,1], index: 4, kind: input, shape index: {}]
  %s5 = inlined_call_operand.<no memory space> [shape: f32[1,1], index: 5, kind: input, shape index: {}]
  %s6 = inlined_call_operand.vmem [shape: f32[32,1], index: 6, kind: output, shape index: {}]
  %s7 = sld [smem:[#allocation0]]
  $region38: #{tpu_custom_call.1} parent=0
    _
  %s9 = ssub.s32 1, %s7
  %s10 = scalar_select 0, %s9, %s7
  %11 = sst [smem:[#allocation2]] %s4
  %12 = sst [smem:[#allocation3]] %s5
  $region1: #{tpu_custom_call.1} parent=0
    #allocation4 [shape = 'u8[65536]{0}', space=vmem, size = 0x10000, scoped, tag = 'input window, operand 1, single buffered']
    #allocation5 [shape = 's32[1]{0}', space=sflag, size = 0x4, scoped, tag = 'scoped memory for tpu_custom_call.1']
    %13 = vsyncpa [#allocation5], 0
    // Predicated region
    $region2: #{tpu_custom_call.1} parent=1 // pred_check
      _
    $region3: #{tpu_custom_call.1} parent=1 // pred_check_branch
      %15 = sbr.rel (0) target = $region5
    $region4: #{tpu_custom_call.1} parent=1 // pred_region
      _
    $region5: #{tpu_custom_call.1} parent=1 // pred_fallthru
      _
    // Predicated region
    $region6: #{tpu_custom_call.1} parent=1 // pred_check
      _
    $region7: #{tpu_custom_call.1} parent=1 // pred_check_branch
      %17 = sbr.rel (0) target = $region9
    $region8: #{tpu_custom_call.1} parent=1 // pred_region
      %s19 = ssub.s32 2048, 2048
      %20 = vsyncadd [#allocation5], %s19
      %s21 = sshll.u32 [#allocation4], 4
      %s22 = int_to_ptr.vmem [resolvable:$true] %s21
      %27 = dma.hbm_to_vmem [thread:$0]  %s1, 2048, %s22, [#allocation5], 128, 128, 8
    $region9: #{tpu_custom_call.1} parent=1 // pred_fallthru
      _
    // Predicated region
    $region10: #{tpu_custom_call.1} parent=1 // pred_check
      _
    $region11: #{tpu_custom_call.1} parent=1 // pred_check_branch
      %29 = sbr.rel (0) target = $region13
    $region12: #{tpu_custom_call.1} parent=1 // pred_region
      _
    $region13: #{tpu_custom_call.1} parent=1 // pred_fallthru
      _
    // Predicated region
    $region14: #{tpu_custom_call.1} parent=1 // pred_check
      _
    $region15: #{tpu_custom_call.1} parent=1 // pred_check_branch
      %31 = sbr.rel (0) target = $region17
    $region16: #{tpu_custom_call.1} parent=1 // pred_region
      _
    $region17: #{tpu_custom_call.1} parent=1 // pred_fallthru
      _
    // Predicated region
    $region18: #{tpu_custom_call.1} parent=1 // pred_check
      _
    $region19: #{tpu_custom_call.1} parent=1 // pred_check_branch
      %33 = sbr.rel (0) target = $region21
    $region20: #{tpu_custom_call.1} parent=1 // pred_region
      _
    $region21: #{tpu_custom_call.1} parent=1 // pred_fallthru
      _
    // Predicated region
    $region22: #{tpu_custom_call.1} parent=1 // pred_check
      _
    $region23: #{tpu_custom_call.1} parent=1 // pred_check_branch
      %35 = sbr.rel (0) target = $region25
    $region24: #{tpu_custom_call.1} parent=1 // pred_region
      _
    $region25: #{tpu_custom_call.1} parent=1 // pred_fallthru
      _
    // Predicated region
    $region26: #{tpu_custom_call.1} parent=1 // pred_check
      _
    $region27: #{tpu_custom_call.1} parent=1 // pred_check_branch
      %37 = sbr.rel (0) target = $region29
    $region28: #{tpu_custom_call.1} parent=1 // pred_region
      %38 = dma.done [#allocation5], 2048
    $region29: #{tpu_custom_call.1} parent=1 // pred_fallthru
      _
    %s39 = sld [smem:[#allocation2]]
    %s40 = sld [smem:[#allocation3]]
    %v41 = vld [vmem:[%s0] sm:$0xff]
    %v42 = vld [vmem:[%s0 + $0x8] sm:$0xff]
    %v43 = vld [vmem:[%s0 + $0x10] sm:$0xff]
    %v44 = vld [vmem:[%s0 + $0x18] sm:$0xff]
    %v45 = vld [vmem:[#allocation4] sm:$0xff]
    %v46 = vld [vmem:[#allocation4 + $0x8] sm:$0xff]
    %v47 = vld [vmem:[#allocation4 + $0x10] sm:$0xff]
    %v48 = vld [vmem:[#allocation4 + $0x18] sm:$0xff]
    %v49 = vld [vmem:[#allocation4 + $0x20] sm:$0xff]
    %v50 = vld [vmem:[#allocation4 + $0x28] sm:$0xff]
    %v51 = vld [vmem:[#allocation4 + $0x30] sm:$0xff]
    %v52 = vld [vmem:[#allocation4 + $0x38] sm:$0xff]
    %v53 = vld [vmem:[#allocation4 + $0x40] sm:$0xff]
    %v54 = vld [vmem:[#allocation4 + $0x48] sm:$0xff]
    %v55 = vld [vmem:[#allocation4 + $0x50] sm:$0xff]
    %v56 = vld [vmem:[#allocation4 + $0x58] sm:$0xff]
    %v57 = vld [vmem:[#allocation4 + $0x60] sm:$0xff]
    %v58 = vld [vmem:[#allocation4 + $0x68] sm:$0xff]
    %v59 = vld [vmem:[#allocation4 + $0x70] sm:$0xff]
    %v60 = vld [vmem:[#allocation4 + $0x78] sm:$0xff]
    %v61 = vld [vmem:[%s2] sm:$0x1]
    %v62 = vld [vmem:[%s3] sm:$0xff]
    %v63 = vld [vmem:[%s3 + $0x8] sm:$0xff]
    %v64 = vld [vmem:[%s3 + $0x10] sm:$0xff]
    %v65 = vld [vmem:[%s3 + $0x18] sm:$0xff]
    %66 = vmatprep.subr.mxu0 0.0
    %67 = vmatpush1.msra.mxu0 %v45
    %68 = vmatprep.subr.mxu0 0.0
    %69 = vmatpush1.msra.mxu0 %v46
    %70 = vmatprep.subr.mxu0 0.0
    %71 = vmatpush1.msra.mxu0 %v47
    %72 = vmatprep.subr.mxu0 0.0
    %73 = vmatpush1.msra.mxu0 %v48
    %74 = vmatprep.subr.mxu0 0.0
    %75 = vmatpush1.msra.mxu0 %v49
    %76 = vmatprep.subr.mxu0 0.0
    %77 = vmatpush1.msra.mxu0 %v50
    %78 = vmatprep.subr.mxu0 0.0
    %79 = vmatpush1.msra.mxu0 %v51
    %80 = vmatprep.subr.mxu0 0.0
    %81 = vmatpush1.msra.mxu0 %v52
    %82 = vmatprep.subr.mxu0 0.0
    %83 = vmatpush1.msra.mxu0 %v53
    %84 = vmatprep.subr.mxu0 0.0
    %85 = vmatpush1.msra.mxu0 %v54
    %86 = vmatprep.subr.mxu0 0.0
    %87 = vmatpush1.msra.mxu0 %v55
    %88 = vmatprep.subr.mxu0 0.0
    %89 = vmatpush1.msra.mxu0 %v56
    %90 = vmatprep.subr.mxu0 0.0
    %91 = vmatpush1.msra.mxu0 %v57
    %92 = vmatprep.subr.mxu0 0.0
    %93 = vmatpush1.msra.mxu0 %v58
    %94 = vmatprep.subr.mxu0 0.0
    %95 = vmatpush1.msra.mxu0 %v59
    %96 = vmatprep.subr.mxu0 0.0
    %97 = vmatpush1.msra.mxu0 %v60
    %98 = vmatprep.subr.mxu0 0.0
    %99 = vmatpush1.msra.mxu0 0.0
    %100 = vmatprep.subr.mxu0 0.0
    %101 = vmatpush1.msra.mxu0 0.0
    %102 = vmatprep.subr.mxu0 0.0
    %103 = vmatpush1.msra.mxu0 0.0
    %104 = vmatprep.subr.mxu0 0.0
    %105 = vmatpush1.msra.mxu0 0.0
    %106 = vmatprep.subr.mxu0 0.0
    %107 = vmatpush1.msra.mxu0 0.0
    %108 = vmatprep.subr.mxu0 0.0
    %109 = vmatpush1.msra.mxu0 0.0
    %110 = vmatprep.subr.mxu0 0.0
    %111 = vmatpush1.msra.mxu0 0.0
    %112 = vmatprep.subr.mxu0 0.0
    %113 = vmatpush1.msra.mxu0 0.0
    %114 = vmatprep.subr.mxu0 0.0
    %115 = vmatpush1.msra.mxu0 0.0
    %116 = vmatprep.subr.mxu0 0.0
    %117 = vmatpush1.msra.mxu0 0.0
    %118 = vmatprep.subr.mxu0 0.0
    %119 = vmatpush1.msra.mxu0 0.0
    %120 = vmatprep.subr.mxu0 0.0
    %121 = vmatpush1.msra.mxu0 0.0
    %122 = vmatprep.subr.mxu0 0.0
    %123 = vmatpush1.msra.mxu0 0.0
    %124 = vmatprep.subr.mxu0 0.0
    %125 = vmatpush1.msra.mxu0 0.0
    %126 = vmatprep.subr.mxu0 0.0
    %127 = vmatpush1.msra.mxu0 0.0
    %128 = vmatprep.subr.mxu0 0.0
    %129 = vmatpush1.msra.mxu0 0.0
    %130 = vmatprep.mubr.f32.mxu0 0.0
    %131 = vmatmul.mubr.f32.gmra.mrb[0].mxu0 %v41
    %v132 = vpop.f32.mrb[0].mxu0
    %v133 = vadd.f32 0.0, %v132
    %v134 = vpop.f32.mrb[0].mxu0
    %135 = vmatprep.mubr.f32.mxu0 0.0
    %136 = vmatmul.mubr.f32.gmra.mrb[0].mxu0 %v42
    %v137 = vpop.f32.mrb[0].mxu0
    %v138 = vadd.f32 0.0, %v137
    %v139 = vpop.f32.mrb[0].mxu0
    %140 = vmatprep.mubr.f32.mxu0 0.0
    %141 = vmatmul.mubr.f32.gmra.mrb[0].mxu0 %v43
    %v142 = vpop.f32.mrb[0].mxu0
    %v143 = vadd.f32 0.0, %v142
    %v144 = vpop.f32.mrb[0].mxu0
    %145 = vmatprep.mubr.f32.mxu0 0.0
    %146 = vmatmul.mubr.f32.gmra.mrb[0].mxu0 %v44
    %v147 = vpop.f32.mrb[0].mxu0
    %v148 = vadd.f32 0.0, %v147
    %v149 = vpop.f32.mrb[0].mxu0
    %150 = vdwg.mxu0
    %s151 = smul.u32 0, 32
    %v152 = vlaneseq
    %v153 = vshrl.u32 %v152, 7
    %v154 = vadd.s32 %v153, 8
    %v155 = vadd.s32 %v153, 16
    %v156 = vadd.s32 %v153, 24
    %v157 = vstv %s151
    %v158 = vadd.s32 %v157, %v153
    %v159 = vadd.s32 %v157, %v154
    %v160 = vadd.s32 %v157, %v155
    %v161 = vadd.s32 %v157, %v156
    %v162 = vlaneseq
    %v163 = vand.u32 %v162, 127
    %v164 = vmul.u32 %v163, 4
    %vm165 = vcmp.ge.s32.totalorder %v158, %v164
    %vm166 = vcmp.ge.s32.totalorder %v159, %v164
    %vm167 = vcmp.ge.s32.totalorder %v160, %v164
    %vm168 = vcmp.ge.s32.totalorder %v161, %v164
    %v169 = vadd.s32 %v164, 4
    %vm170 = vcmp.lt.s32.totalorder %v158, %v169
    %vm171 = vcmp.lt.s32.totalorder %v159, %v169
    %vm172 = vcmp.lt.s32.totalorder %v160, %v169
    %vm173 = vcmp.lt.s32.totalorder %v161, %v169
    %vm174 = vmand %vm165, %vm170
    %vm175 = vmand %vm166, %vm171
    %vm176 = vmand %vm167, %vm172
    %vm177 = vmand %vm168, %vm173
    %vm178 = vcmp.lt.s32.totalorder %v163, 8
    %vm179 = vcmp.lt.s32.totalorder %v158, 32
    %vm180 = vcmp.lt.s32.totalorder %v159, 32
    %vm181 = vcmp.lt.s32.totalorder %v160, 32
    %vm182 = vcmp.lt.s32.totalorder %v161, 32
    %v183 = vmul.f32 %v41, %v41
    %v184 = vmul.f32 %v42, %v42
    %v185 = vmul.f32 %v43, %v43
    %v186 = vmul.f32 %v44, %v44
    %187 = vadd.xlane.f32.xlu0 %v183
    %v188 = vpop.xlane.xlu0 %187
    %189 = vadd.xlane.f32.xlu0 %v184
    %v190 = vpop.xlane.xlu0 %189
    %191 = vadd.xlane.f32.xlu0 %v185
    %v192 = vpop.xlane.xlu0 %191
    %193 = vadd.xlane.f32.xlu0 %v186
    %v194 = vpop.xlane.xlu0 %193
    %v195 = vmax.f32 %v188, 1e-16
    %v196 = vmax.f32 %v190, 1e-16
    %v197 = vmax.f32 %v192, 1e-16
    %v198 = vmax.f32 %v194, 1e-16
    %v199 = vrsqrt.pop %v195
    %v200 = vrsqrt.pop %v196
    %v201 = vrsqrt.pop %v197
    %v202 = vrsqrt.pop %v198
    %v203 = vmul.f32 %v133, %v199
    %v204 = vmul.f32 %v138, %v200
    %v205 = vmul.f32 %v143, %v201
    %v206 = vmul.f32 %v148, %v202
    %v208 = vlaneseq
    %v209 = vshrl.u32 %v208, 7
    %v210 = vsub.s32 0, %v209
    %v211 = vrot.slane %v61, %v210
    %v213 = vmul.f32 %v203, %v211
    %v214 = vmul.f32 %v204, %v211
    %v215 = vmul.f32 %v205, %v211
    %v216 = vmul.f32 %v206, %v211
    %v217 = vsel %vm174, %v133, 0.0
    %v218 = vsel %vm175, %v138, 0.0
    %v219 = vsel %vm176, %v143, 0.0
    %v220 = vsel %vm177, %v148, 0.0
    %221 = vadd.xlane.f32.xlu0 %v217
    %v222 = vpop.xlane.xlu0 %221
    %223 = vadd.xlane.f32.xlu0 %v218
    %v224 = vpop.xlane.xlu0 %223
    %225 = vadd.xlane.f32.xlu0 %v219
    %v226 = vpop.xlane.xlu0 %225
    %227 = vadd.xlane.f32.xlu0 %v220
    %v228 = vpop.xlane.xlu0 %227
    %v229 = vmul.f32 %v222, 4.0
    %v230 = vmul.f32 %v224, 4.0
    %v231 = vmul.f32 %v226, 4.0
    %v232 = vmul.f32 %v228, 4.0
    %v233 = vsub.f32 %v229, %v188
    %v234 = vsub.f32 %v230, %v190
    %v235 = vsub.f32 %v231, %v192
    %v236 = vsub.f32 %v232, %v194
    %v237 = vmul.f32 %v233, 0.33333334
    %v238 = vmul.f32 %v234, 0.33333334
    %v239 = vmul.f32 %v235, 0.33333334
    %v240 = vmul.f32 %v236, 0.33333334
    %v241 = vmul.f32 %v62, 16.0
    %v242 = vmul.f32 %v63, 16.0
    %v243 = vmul.f32 %v64, 16.0
    %v244 = vmul.f32 %v65, 16.0
    %v245 = vmul.f32 %v222, 8.0
    %v246 = vmul.f32 %v224, 8.0
    %v247 = vmul.f32 %v226, 8.0
    %v248 = vmul.f32 %v228, 8.0
    %v249 = vsub.f32 %v241, %v245
    %v250 = vsub.f32 %v242, %v246
    %v251 = vsub.f32 %v243, %v247
    %v252 = vsub.f32 %v244, %v248
    %v253 = vadd.f32 %v249, %v188
    %v254 = vadd.f32 %v250, %v190
    %v255 = vadd.f32 %v251, %v192
    %v256 = vadd.f32 %v252, %v194
    %v257 = vmul.f32 %v253, 0.11111112
    %v258 = vmul.f32 %v254, 0.11111112
    %v259 = vmul.f32 %v255, 0.11111112
    %v260 = vmul.f32 %v256, 0.11111112
    %v261 = vmax.f32 %v257, 1e-16
    %v262 = vmax.f32 %v258, 1e-16
    %v263 = vmax.f32 %v259, 1e-16
    %v264 = vmax.f32 %v260, 1e-16
    %v265 = vrsqrt.pop %v261
    %v266 = vrsqrt.pop %v262
    %v267 = vrsqrt.pop %v263
    %v268 = vrsqrt.pop %v264
    %v269 = vmul.f32 %v237, %v199
    %v270 = vmul.f32 %v238, %v200
    %v271 = vmul.f32 %v239, %v201
    %v272 = vmul.f32 %v240, %v202
    %v273 = vmul.f32 %v269, %v265
    %v274 = vmul.f32 %v270, %v266
    %v275 = vmul.f32 %v271, %v267
    %v276 = vmul.f32 %v272, %v268
    %278 = vset.pattern.permute.xlu0 0
    %279 = vperm.xlu0 %278, %v273
    %v280 = vpop.permute.xlu0 %279
    %283 = vset.pattern.permute.xlu0 0
    %284 = vperm.xlu0 %283, %v274
    %v285 = vpop.permute.xlu0 %284
    %288 = vset.pattern.permute.xlu0 0
    %289 = vperm.xlu0 %288, %v275
    %v290 = vpop.permute.xlu0 %289
    %293 = vset.pattern.permute.xlu0 0
    %294 = vperm.xlu0 %293, %v276
    %v295 = vpop.permute.xlu0 %294
    %v297 = vsel %vm174, %v280, %v213
    %v298 = vsel %vm175, %v285, %v214
    %v299 = vsel %vm176, %v290, %v215
    %v300 = vsel %vm177, %v295, %v216
    %v301 = vmax.f32 %v297, 1e-06
    %v302 = vmax.f32 %v298, 1e-06
    %v303 = vmax.f32 %v299, 1e-06
    %v304 = vmax.f32 %v300, 1e-06
    %v305 = vstv %s39
    %v306 = vmul.f32 %v301, %v305
    %v307 = vmul.f32 %v302, %v305
    %v308 = vmul.f32 %v303, %v305
    %v309 = vmul.f32 %v304, %v305
    %v310 = vstv %s40
    %v311 = vadd.f32 %v306, %v310
    %v312 = vadd.f32 %v307, %v310
    %v313 = vadd.f32 %v308, %v310
    %v314 = vadd.f32 %v309, %v310
    %v315 = vmax.f32 %v273, 1e-06
    %v316 = vmax.f32 %v274, 1e-06
    %v317 = vmax.f32 %v275, 1e-06
    %v318 = vmax.f32 %v276, 1e-06
    %v319 = vmul.f32 %v315, %v305
    %v320 = vmul.f32 %v316, %v305
    %v321 = vmul.f32 %v317, %v305
    %v322 = vmul.f32 %v318, %v305
    %v323 = vadd.f32 %v319, %v310
    %v324 = vadd.f32 %v320, %v310
    %v325 = vadd.f32 %v321, %v310
    %v326 = vadd.f32 %v322, %v310
    %s327 = smul.f32 %s39, 1e-06
    %s328 = smax.f32 %s39, %s327
    %s329 = sadd.f32 %s328, %s40
    %v330 = vstv %s329
    %v331 = vsub.f32 %v311, %v330
    %v332 = vsub.f32 %v312, %v330
    %v333 = vsub.f32 %v313, %v330
    %v334 = vsub.f32 %v314, %v330
    %v335 = vmul.f32 %v331, 1.442695
    %v336 = vpow.pop %v335
    %v337 = vmul.f32 %v332, 1.442695
    %v338 = vpow.pop %v337
    %v339 = vmul.f32 %v333, 1.442695
    %v340 = vpow.pop %v339
    %v341 = vmul.f32 %v334, 1.442695
    %v342 = vpow.pop %v341
    %v343 = vsel %vm178, 1, 0
    %vm344 = vcmp.eq.s32.totalorder %v343, 1
    %v345 = vsel %vm344, %v336, 0.0
    %v346 = vsel %vm344, %v338, 0.0
    %v347 = vsel %vm344, %v340, 0.0
    %v348 = vsel %vm344, %v342, 0.0
    %349 = vadd.xlane.f32.xlu0 %v345
    %v350 = vpop.xlane.xlu0 %349
    %351 = vadd.xlane.f32.xlu0 %v346
    %v352 = vpop.xlane.xlu0 %351
    %353 = vadd.xlane.f32.xlu0 %v347
    %v354 = vpop.xlane.xlu0 %353
    %355 = vadd.xlane.f32.xlu0 %v348
    %v356 = vpop.xlane.xlu0 %355
    %v357 = vlog2.pop %v350
    %v358 = vmul.f32 %v357, 0.6931472
    %v359 = vlog2.pop %v352
    %v360 = vmul.f32 %v359, 0.6931472
    %v361 = vlog2.pop %v354
    %v362 = vmul.f32 %v361, 0.6931472
    %v363 = vlog2.pop %v356
    %v364 = vmul.f32 %v363, 0.6931472
    %v365 = vadd.f32 %v358, %v330
    %v366 = vadd.f32 %v360, %v330
    %v367 = vadd.f32 %v362, %v330
    %v368 = vadd.f32 %v364, %v330
    %v369 = vsub.f32 %v365, %v323
    %v370 = vsub.f32 %v366, %v324
    %v371 = vsub.f32 %v367, %v325
    %v372 = vsub.f32 %v368, %v326
    %v373 = vsel %vm179, %v369, 0.0
    %v374 = vsel %vm180, %v370, 0.0
    %v375 = vsel %vm181, %v371, 0.0
    %v376 = vsel %vm182, %v372, 0.0
    %vm377 = vcmask 7168
    %378 = vst.msk [vmem:[%s6] sm:$0xff] %vm377, %v373
    %379 = vst.msk [vmem:[%s6 + $0x8] sm:$0xff] %vm377, %v374
    %380 = vst.msk [vmem:[%s6 + $0x10] sm:$0xff] %vm377, %v375
    %381 = vst.msk [vmem:[%s6 + $0x18] sm:$0xff] %vm377, %v376
    // Predicated region
    $region30: #{tpu_custom_call.1} parent=1 // pred_check
      _
    $region31: #{tpu_custom_call.1} parent=1 // pred_check_branch
      %383 = sbr.rel (0) target = $region33
    $region32: #{tpu_custom_call.1} parent=1 // pred_region
      _
    $region33: #{tpu_custom_call.1} parent=1 // pred_fallthru
      _
    // Predicated region
    $region34: #{tpu_custom_call.1} parent=1 // pred_check
      _
    $region35: #{tpu_custom_call.1} parent=1 // pred_check_branch
      %385 = sbr.rel (0) target = $region37
    $region36: #{tpu_custom_call.1} parent=1 // pred_region
      _
    $region37: #{tpu_custom_call.1} parent=1 // pred_fallthru
      _
    %386 = vsyncpa [#allocation5], 1

</llo_original>
